<compile_context>
chip_gen: v7x
topology: tpu7x:2x2x1
jax: 0.10.0
libtpu: 0.0.40
codegen_flags: <defaults>
</compile_context>

<pallas_src>
import functools
import math

import jax
import jax.numpy as jnp
from jax.experimental import pallas as pl
from jax.experimental.pallas import tpu as pltpu

_LANE = 128                                   # TPU lane width
_TILE_CANDIDATES = (2048, 1024, 512, 256, 128)  # output-L tile candidates (multiples of 128)


def _same_pads(l, k, stride, dilation):
    """SAME padding with the odd leftover on the right (matches conv1d_same_padding)."""
    halo = (k - 1) * dilation
    out_rows = -(-l // stride)
    pad_total = max(0, (out_rows - 1) * stride + halo + 1 - l)
    pad_left = pad_total // 2
    pad_right = pad_total - pad_left
    return pad_left, pad_right, out_rows


def _vmem_capacity_bytes():
    try:
        return int(pltpu.get_tpu_info().vmem_capacity_bytes)
    except Exception:
        return 128 * 1024 * 1024   # conservative v5e/v6e default


def _stack_taps(x_tile, halo, *, kernel_size, dilation, tile_l):
    """Build the (K*C_in, tile_l) tap-stacked window from static slices of tile (+ halo)."""
    pieces = []
    for kk in range(kernel_size):
        off = kk * dilation
        if off == 0:
            pieces.append(x_tile[:, :tile_l])
        elif halo is None:
            pieces.append(x_tile[:, off:off + tile_l])
        else:
            # Tap window spans the current tile tail plus the first `off` halo lanes.
            pieces.append(jnp.concatenate([x_tile[:, off:], halo[:, :off]], axis=-1))
    if len(pieces) == 1:
        return pieces[0]
    return jnp.concatenate(pieces, axis=0)


def _conv1d_full_kernel(x_ref, w_ref, b_ref, o_ref, *, kernel_size, dilation, tile_l):
    # x_ref: (1, C_in, L_pad) whole padded sequence; w_ref: (C_out, K*C_in); b_ref: (C_out,1) f32
    stacked = _stack_taps(x_ref[0], None, kernel_size=kernel_size, dilation=dilation,
                          tile_l=tile_l)
    res = jnp.dot(w_ref[...], stacked, preferred_element_type=jnp.float32) + b_ref[...]
    o_ref[0] = res.astype(o_ref.dtype)


def _conv1d_tiled_kernel(x_ref, halo_ref, w_ref, b_ref, o_ref, *, kernel_size, dilation, tile_l):
    # x_ref: (1, C_in, tile_l) current L tile; halo_ref: (1, C_in, 128) next 128 elements.
    stacked = _stack_taps(x_ref[0], halo_ref[0], kernel_size=kernel_size, dilation=dilation,
                          tile_l=tile_l)
    res = jnp.dot(w_ref[...], stacked, preferred_element_type=jnp.float32) + b_ref[...]
    o_ref[0] = res.astype(o_ref.dtype)


def conv1d_same(x_ncl, weight, bias=None, *, stride=1, dilation=1, groups=1,
                operand_dtype=None, max_tile_l=None):
    """SAME-padded conv1d matching bert4torch Conv1d.forward.

    x_ncl : (N, C_in, L)
    weight: (C_out, C_in // groups, K)
    bias  : (C_out,) or None
    operand_dtype: optional reduced-precision matmul operand dtype (e.g. jnp.bfloat16);
                   accumulation stays fp32 and output keeps the input dtype.
    max_tile_l: optional cap on the output-L tile (testing / tuning hook).
    """
    assert stride == 1 and groups == 1, \
        "TODO(synk): stride>1 / groups>1 need strided slicing / grouped matmuls"

    n, c_in, l = x_ncl.shape
    c_out, c_in_g, k = weight.shape
    assert c_in_g == c_in

    halo = (k - 1) * dilation
    pad_left, pad_right, l_out = _same_pads(l, k, stride, dilation)

    out_dtype = x_ncl.dtype
    op_dtype = jnp.dtype(operand_dtype) if operand_dtype is not None else jnp.dtype(out_dtype)
    op_isz = op_dtype.itemsize
    out_isz = jnp.dtype(out_dtype).itemsize

    # Fused weight layout: (C_out, K*C_in), ordering matches the tap-stacked window
    # (tap index outer, C_in inner).  Cast once in the wrapper (not per grid step).
    w_fused = jnp.transpose(weight, (0, 2, 1)).reshape(c_out, k * c_in).astype(op_dtype)
    b2 = (bias if bias is not None else jnp.zeros((c_out,), weight.dtype))
    b2 = b2.reshape(c_out, 1).astype(jnp.float32)

    vmem_cap = _vmem_capacity_bytes()
    vmem_ceiling = (vmem_cap * 3) // 4   # never request the full per-core VMEM (64 MiB on v7x)

    def _tiled_vmem_need(tl):
        io = 2 * c_in * (tl + _LANE) * op_isz + 2 * c_out * tl * out_isz   # dbl-buffered tiles
        wgt = 2 * (k * c_in * c_out * op_isz + c_out * 4)                  # weight + bias blocks
        tmp = 2 * (k * c_in * tl * op_isz + c_out * tl * 4)                # stacked window + acc
        return io + wgt + tmp

    # Per-generation tile: largest candidate that fits the VMEM budget.
    candidates = [c for c in _TILE_CANDIDATES if max_tile_l is None or c <= max_tile_l]
    if not candidates:
        candidates = [_TILE_CANDIDATES[-1]]
    tile_l = candidates[-1]
    for cand in candidates:
        if _tiled_vmem_need(cand) <= vmem_ceiling:
            tile_l = cand
            break

    use_tiling = (l_out > tile_l) and (halo <= _LANE)

    if use_tiling:
        num_tiles = -(-l_out // tile_l)
        # Pad so every current tile and its 128-lane halo block are in bounds.
        l_arr = num_tiles * tile_l + _LANE
        x_pad = jnp.pad(x_ncl, ((0, 0), (0, 0), (pad_left, l_arr - l - pad_left)))
        x_pad = x_pad.astype(op_dtype)
        grid = (n, num_tiles)
        halo_blocks = tile_l // _LANE
        in_specs = [
            pl.BlockSpec((1, c_in, tile_l), lambda i, t: (i, 0, t)),
            pl.BlockSpec((1, c_in, _LANE), lambda i, t: (i, 0, (t + 1) * halo_blocks)),
            pl.BlockSpec((c_out, k * c_in), lambda i, t: (0, 0)),
            pl.BlockSpec((c_out, 1), lambda i, t: (0, 0)),
        ]
        out_spec = pl.BlockSpec((1, c_out, tile_l), lambda i, t: (i, 0, t))
        kernel = functools.partial(_conv1d_tiled_kernel, kernel_size=k, dilation=dilation,
                                   tile_l=tile_l)
        operands = (x_pad, x_pad, w_fused, b2)
        dims = ("parallel", "parallel")
        vmem_need = _tiled_vmem_need(tile_l)
        bytes_accessed = int(x_pad.size * op_isz                        # each tile read once
                             + n * num_tiles * c_in * _LANE * op_isz    # halo re-fetch
                             + w_fused.size * op_isz + b2.size * 4
                             + n * c_out * l_out * out_isz)
    else:
        l_arr = l + pad_left + pad_right
        x_pad = jnp.pad(x_ncl, ((0, 0), (0, 0), (pad_left, pad_right))).astype(op_dtype)
        # Whole padded sequence resident in VMEM: only valid for short sequences or large
        # dilated halos on sequences that still fit.
        vmem_need = (2 * c_in * l_arr * op_isz + 2 * c_out * l_out * out_isz
                     + 2 * (k * c_in * c_out * op_isz + c_out * 4)
                     + 2 * (k * c_in * l_out * op_isz + c_out * l_out * 4))
        assert vmem_need <= vmem_ceiling, (
            "TODO(synk): untiled fallback (halo > 128 lanes) exceeds the VMEM budget "
            f"({vmem_need} > {vmem_ceiling} bytes); needs a manual double-buffered DMA path")
        grid = (n,)
        in_specs = [
            pl.BlockSpec((1, c_in, l_arr), lambda i: (i, 0, 0)),
            pl.BlockSpec((c_out, k * c_in), lambda i: (0, 0)),
            pl.BlockSpec((c_out, 1), lambda i: (0, 0)),
        ]
        out_spec = pl.BlockSpec((1, c_out, l_out), lambda i: (i, 0, 0))
        kernel = functools.partial(_conv1d_full_kernel, kernel_size=k, dilation=dilation,
                                   tile_l=l_out)
        operands = (x_pad, w_fused, b2)
        dims = ("parallel",)
        bytes_accessed = int(x_pad.size * op_isz + w_fused.size * op_isz + b2.size * 4
                             + n * c_out * l_out * out_isz)

    vmem_limit = int(min(vmem_ceiling, max(32 * 1024 * 1024, 2 * vmem_need)))
    flops = 2 * n * c_out * c_in * k * l_out

    out = pl.pallas_call(
        kernel,
        out_shape=jax.ShapeDtypeStruct((n, c_out, l_out), out_dtype),
        grid=grid,
        in_specs=in_specs,
        out_specs=out_spec,
        compiler_params=pltpu.CompilerParams(
            dimension_semantics=dims,
            vmem_limit_bytes=vmem_limit),
        cost_estimate=pl.CostEstimate(flops=flops, transcendentals=0,
                                      bytes_accessed=bytes_accessed),
    )(*operands)
    return out


def _reference(x, w, b, stride, dilation, groups):
    pad_l, pad_r, _ = _same_pads(x.shape[2], w.shape[2], stride, dilation)
    out = jax.lax.conv_general_dilated(
        x, w, window_strides=(stride,), padding=[(pad_l, pad_r)],
        rhs_dilation=(dilation,), dimension_numbers=("NCH", "OIH", "NCH"),
        feature_group_count=groups, precision=jax.lax.Precision.HIGHEST)
    if b is not None:
        out = out + b[None, :, None]
    return out


if __name__ == "__main__":
    base_key = jax.random.PRNGKey(0)

    def run_case(case_id, batch, c_in, c_out, ksz, length, dilation=1,
                 operand_dtype=None, max_tile_l=None, tol=1e-4):
        kx, kw, kb = jax.random.split(jax.random.fold_in(base_key, case_id), 3)
        # deterministic parameter init matching _ConvNd.reset_parameters
        stdv = 1.0 / math.sqrt(c_in * ksz)
        w = jax.random.uniform(kw, (c_out, c_in, ksz), jnp.float32, minval=-stdv, maxval=stdv)
        b = jax.random.uniform(kb, (c_out,), jnp.float32, minval=-stdv, maxval=stdv)
        x = jax.random.normal(kx, (batch, c_in, length), jnp.float32)

        out = conv1d_same(x, w, b, stride=1, dilation=dilation, groups=1,
                          operand_dtype=operand_dtype, max_tile_l=max_tile_l)
        out = jax.block_until_ready(out)

        ref = _reference(x, w, b, 1, dilation, 1)
        assert out.shape == ref.shape, (out.shape, ref.shape)
        err = float(jnp.max(jnp.abs(out - ref)))
        assert err < tol, f"case {case_id}: max abs err {err}"

    # Module-consistent small config (single-tile / untiled path).
    run_case(0, batch=2, c_in=4, c_out=6, ksz=3, length=16)
    # Tiled path (forced 256-lane tile): 3 full tiles along L.
    run_case(1, batch=2, c_in=8, c_out=16, ksz=3, length=768, max_tile_l=256)
    # Tiled path with dilation + masked partial last tile.
    run_case(2, batch=1, c_in=8, c_out=8, ksz=5, length=700, dilation=2, max_tile_l=256)
    # Wrapper-side bf16 operands (fp32 accumulation), tiled path.
    run_case(3, batch=2, c_in=8, c_out=16, ksz=3, length=768, max_tile_l=256,
             operand_dtype=jnp.bfloat16, tol=5e-2)
    # Auto-derived (per-generation) large tile with masked partial last tile.
    run_case(4, batch=2, c_in=8, c_out=16, ksz=3, length=4500)

    print("KERNEL_OK")
</pallas_src>

<mosaic_0001>
module attributes {stable_mosaic.version = 11 : i64} {
  func.func @_conv1d_full_kernel(%arg0: i32, %arg1: memref<1x4x18xf32, #tpu.memory_space<vmem>>, %arg2: memref<6x12xf32, #tpu.memory_space<vmem>>, %arg3: memref<6x1xf32, #tpu.memory_space<vmem>>, %arg4: memref<1x6x16xf32, #tpu.memory_space<vmem>>) attributes {dimension_semantics = [#tpu.dimension_semantics<parallel>], iteration_bounds = array<i64: 2>, scalar_prefetch = 0 : i64, scratch_operands = 0 : i64, tpu.core_type = #tpu.core_type<tc>, window_params = [{transform_indices = @transform_0, window_bounds = array<i64: 1, 4, 18>}, {pipeline_mode = #tpu.pipeline_mode<synchronous>, transform_indices = @transform_1, window_bounds = array<i64: 6, 12>}, {pipeline_mode = #tpu.pipeline_mode<synchronous>, transform_indices = @transform_2, window_bounds = array<i64: 6, 1>}, {transform_indices = @transform_3, window_bounds = array<i64: 1, 6, 16>}]} {
    %c0 = arith.constant 0 : index
    %c0_0 = arith.constant 0 : index
    %c0_1 = arith.constant 0 : index
    %0 = vector.load %arg1[%c0, %c0_0, %c0_1] : memref<1x4x18xf32, #tpu.memory_space<vmem>>, vector<1x4x18xf32>
    %1 = vector.shape_cast %0 : vector<1x4x18xf32> to vector<4x18xf32>
    %2 = vector.extract_strided_slice %1 {offsets = [0, 0], sizes = [4, 16], strides = [1, 1]} : vector<4x18xf32> to vector<4x16xf32>
    %3 = vector.extract_strided_slice %1 {offsets = [0, 1], sizes = [4, 16], strides = [1, 1]} : vector<4x18xf32> to vector<4x16xf32>
    %4 = vector.extract_strided_slice %1 {offsets = [0, 2], sizes = [4, 16], strides = [1, 1]} : vector<4x18xf32> to vector<4x16xf32>
    %5 = tpu.concatenate %2, %3, %4 in 0 : vector<4x16xf32>, vector<4x16xf32>, vector<4x16xf32> -> vector<12x16xf32>
    %c0_2 = arith.constant 0 : index
    %c0_3 = arith.constant 0 : index
    %6 = vector.load %arg2[%c0_2, %c0_3] : memref<6x12xf32, #tpu.memory_space<vmem>>, vector<6x12xf32>
    %cst = arith.constant dense<0.000000e+00> : vector<6x16xf32>
    %7 = tpu.matmul %6, %5, %cst {dimension_numbers = #tpu.dot_dimension_numbers<[1], [0], [0], [1], [0, 0, 1, 1], [], []>} : vector<6x12xf32>, vector<12x16xf32>, vector<6x16xf32> -> vector<6x16xf32>
    %c0_4 = arith.constant 0 : index
    %c0_5 = arith.constant 0 : index
    %8 = vector.load %arg3[%c0_4, %c0_5] : memref<6x1xf32, #tpu.memory_space<vmem>>, vector<6x1xf32>
    %9 = vector.broadcast %8 : vector<6x1xf32> to vector<6x16xf32>
    %10 = arith.addf %7, %9 : vector<6x16xf32>
    %c0_6 = arith.constant 0 : index
    %c0_7 = arith.constant 0 : index
    %c0_8 = arith.constant 0 : index
    %11 = vector.load %arg4[%c0_6, %c0_7, %c0_8] : memref<1x6x16xf32, #tpu.memory_space<vmem>>, vector<1x6x16xf32>
    %12 = vector.shape_cast %11 : vector<1x6x16xf32> to vector<6x16xf32>
    %13 = vector.shape_cast %10 : vector<6x16xf32> to vector<1x6x16xf32>
    tpu.vector_store %arg4[%c0_6, %c0_7, %c0_8], %13 {strides = array<i32>} : memref<1x6x16xf32, #tpu.memory_space<vmem>>, vector<1x6x16xf32>,
    return
  }
  func.func @transform_0(%arg0: i32) -> (i32, i32, i32) {
    %c0_i32 = arith.constant 0 : i32
    %c0_i32_0 = arith.constant 0 : i32
    %c0_i32_1 = arith.constant 0 : i32
    return %arg0, %c0_i32, %c0_i32_0 : i32, i32, i32
  }
  func.func @transform_1(%arg0: i32) -> (i32, i32) {
    %c0_i32 = arith.constant 0 : i32
    %c0_i32_0 = arith.constant 0 : i32
    %c0_i32_1 = arith.constant 0 : i32
    return %c0_i32, %c0_i32_0 : i32, i32
  }
  func.func @transform_2(%arg0: i32) -> (i32, i32) {
    %c0_i32 = arith.constant 0 : i32
    %c0_i32_0 = arith.constant 0 : i32
    %c0_i32_1 = arith.constant 0 : i32
    return %c0_i32, %c0_i32_0 : i32, i32
  }
  func.func @transform_3(%arg0: i32) -> (i32, i32, i32) {
    %c0_i32 = arith.constant 0 : i32
    %c0_i32_0 = arith.constant 0 : i32
    %c0_i32_1 = arith.constant 0 : i32
    return %arg0, %c0_i32, %c0_i32_0 : i32, i32, i32
  }
}

</mosaic_0001>

<llo_original>
// kernel: tpu_custom_call.1
$region0: #{tpu_custom_call.1}
  #allocation0 [shape = 'u32[]', space=smem, size = 0x4, offset = 0x4, fixed_abs, tag = 'smem constant byte address 0x4 - core index']
  #allocation1 [shape = 'u32[144,128]{1,0:T(1,128)}', space=vmem, size = 0x12000, scoped, tag = 'internal scratch']
  %s0 = inlined_call_operand.vmem [shape: f32[2,4,18], index: 0, kind: input, shape index: {}]
  %s1 = inlined_call_operand.hbm [shape: f32[6,12], index: 1, kind: input, shape index: {}]
  %s2 = inlined_call_operand.vmem [shape: f32[6,1], index: 2, kind: input, shape index: {}]
  %s3 = inlined_call_operand.vmem [shape: f32[2,6,16], index: 3, kind: output, shape index: {}]
  %s4 = sld [smem:[#allocation0]]
  $region49: #{tpu_custom_call.1} parent=0
    _
  %s6 = ssub.s32 1, %s4
  %s7 = scalar_select 0, %s6, %s4
  $region1: #{tpu_custom_call.1} parent=0
    #allocation2 [shape = 'u8[4096]{0}', space=vmem, size = 0x1000, scoped, tag = 'input window, operand 1, single buffered']
    #allocation3 [shape = 's32[2]{0}', space=sflag, size = 0x8, scoped, tag = 'scoped memory for tpu_custom_call.1']
    %8 = vsyncpa [#allocation3], 0
    loop: start=0, step=1, limit=4
    $region2: #{tpu_custom_call.1} parent=1 // loop_pre_header
      _
    $region3: #{tpu_custom_call.1} parent=1 // loop_header
      %s10 = sphi 0, %s14
      %p11 = scmp.ge.s32.totalorder %s10, 4
      %s20 = sphi 0, %s22
      %s23 = sphi 0, %s20
      %s24 = sphi 0, %s23
      %s40 = sphi 0, %s24
      %s44 = sphi 0, %s44
      %s46 = sphi 0, %s44
      %s47 = sphi 0, %s46
      %s61 = sphi 0, %s47
      %s65 = sphi 0, %s65
      %s67 = sphi 0, %s65
      %s68 = sphi 0, %s67
      %s82 = sphi 0, %s68
      %s88 = sphi 0, %s90
      %s91 = sphi 0, %s88
      %s92 = sphi 0, %s91
      %s108 = sphi 0, %s92
    $region4: #{tpu_custom_call.1} parent=1 // loop_header_branch
      %13 = sbr.rel (%p11) target = $region8
    $region5: #{tpu_custom_call.1} parent=1 // loop_body
      %s15 = ssub.s32 %s10, 1
      %s16 = ssub.s32 %s10, 2
      %s17 = sadd.s32 %s10, 1
      %s18 = ssub.s32 %s10, %s17
      %p19 = scmp.eq.s32.totalorder %s18, 0
      %s21 = sadd.s32 %s20, 1
      %s22 = scalar_select %p19, %s20, %s21
      %p25 = pneg %p19
      %p26 = scmp.eq.s32.totalorder %s10, 1
      %p27 = por %p25, %p26
      %p28 = scmp.ne.s32.totalorder %s20, %s23
      %p29 = scmp.eq.s32.totalorder %s10, 0
      %p30 = por %p28, %p29
      %p31 = scmp.ne.s32.totalorder %s20, %s23
      %p32 = scmp.eq.s32.totalorder %s15, 1
      %p33 = por %p31, %p32
      %p34 = scmp.ne.s32.totalorder %s23, %s24
      %p35 = scmp.eq.s32.totalorder %s15, 0
      %p36 = por %p34, %p35
      %p37 = scmp.ne.s32.totalorder %s23, %s24
      %p38 = scmp.eq.s32.totalorder %s16, 1
      %p39 = por %p37, %p38
      %p41 = scmp.ne.s32.totalorder %s24, %s40
      %p42 = scmp.eq.s32.totalorder %s16, 0
      %p43 = por %p41, %p42
      %s45 = sadd.s32 %s44, 1
      %p48 = scmp.eq.s32.totalorder %s10, 1
      %p49 = scmp.ne.s32.totalorder %s44, %s46
      %p50 = scmp.eq.s32.totalorder %s10, 0
      %p51 = por %p49, %p50
      %p52 = scmp.ne.s32.totalorder %s44, %s46
      %p53 = scmp.eq.s32.totalorder %s15, 1
      %p54 = por %p52, %p53
      %p55 = scmp.ne.s32.totalorder %s46, %s47
      %p56 = scmp.eq.s32.totalorder %s15, 0
      %p57 = por %p55, %p56
      %p58 = scmp.ne.s32.totalorder %s46, %s47
      %p59 = scmp.eq.s32.totalorder %s16, 1
      %p60 = por %p58, %p59
      %p62 = scmp.ne.s32.totalorder %s47, %s61
      %p63 = scmp.eq.s32.totalorder %s16, 0
      %p64 = por %p62, %p63
      %s66 = sadd.s32 %s65, 1
      %p69 = scmp.eq.s32.totalorder %s10, 1
      %p70 = scmp.ne.s32.totalorder %s65, %s67
      %p71 = scmp.eq.s32.totalorder %s10, 0
      %p72 = por %p70, %p71
      %p73 = scmp.ne.s32.totalorder %s65, %s67
      %p74 = scmp.eq.s32.totalorder %s15, 1
      %p75 = por %p73, %p74
      %p76 = scmp.ne.s32.totalorder %s67, %s68
      %p77 = scmp.eq.s32.totalorder %s15, 0
      %p78 = por %p76, %p77
      %p79 = scmp.ne.s32.totalorder %s67, %s68
      %p80 = scmp.eq.s32.totalorder %s16, 1
      %p81 = por %p79, %p80
      %p83 = scmp.ne.s32.totalorder %s68, %s82
      %p84 = scmp.eq.s32.totalorder %s16, 0
      %p85 = por %p83, %p84
      %s86 = ssub.s32 %s10, %s17
      %p87 = scmp.eq.s32.totalorder %s86, 0
      %s89 = sadd.s32 %s88, 1
      %s90 = scalar_select %p87, %s88, %s89
      %p93 = pneg %p87
      %p94 = scmp.eq.s32.totalorder %s10, 1
      %p95 = por %p93, %p94
      %p96 = scmp.ne.s32.totalorder %s88, %s91
      %p97 = scmp.eq.s32.totalorder %s10, 0
      %p98 = por %p96, %p97
      %p99 = scmp.ne.s32.totalorder %s88, %s91
      %p100 = scmp.eq.s32.totalorder %s15, 1
      %p101 = por %p99, %p100
      %p102 = scmp.ne.s32.totalorder %s91, %s92
      %p103 = scmp.eq.s32.totalorder %s15, 0
      %p104 = por %p102, %p103
      %p105 = scmp.ne.s32.totalorder %s91, %s92
      %p106 = scmp.eq.s32.totalorder %s16, 1
      %p107 = por %p105, %p106
      %p109 = scmp.ne.s32.totalorder %s92, %s108
      %p110 = scmp.eq.s32.totalorder %s16, 0
      %p111 = por %p109, %p110
      %p112 = scmp.le.s32.totalorder 1, %s10
      %p113 = scmp.lt.s32.totalorder %s10, 3
      %p114 = pnand %p112, %p113
      %p115 = pneg %p114
      // Predicated region
      $region9: #{tpu_custom_call.1} parent=5 // pred_check
        _
      $region10: #{tpu_custom_call.1} parent=5 // pred_check_branch
        %117 = sbr.rel (%p114) target = $region12
      $region11: #{tpu_custom_call.1} parent=5 // pred_region
        %s118 = ssub.s32 %s10, 1
        // Predicated region
        $region13: #{tpu_custom_call.1} parent=11 // pred_check
          %p119 = pneg %p57
        $region14: #{tpu_custom_call.1} parent=11 // pred_check_branch
          %121 = sbr.rel (%p119) target = $region16
        $region15: #{tpu_custom_call.1} parent=11 // pred_region
          %s123 = ssub.s32 128, 128
          %124 = vsyncadd [#allocation3], %s123
          %s126 = sshll.u32 [#allocation2], 4
          %s127 = int_to_ptr.vmem [resolvable:$true] %s126
          %129 = dma.hbm_to_vmem [thread:$0]  %s1, 128, %s127, [#allocation3]
        $region16: #{tpu_custom_call.1} parent=11 // pred_fallthru
          _
        // Predicated region
        $region17: #{tpu_custom_call.1} parent=11 // pred_check
          %p130 = pneg %p78
        $region18: #{tpu_custom_call.1} parent=11 // pred_check_branch
          %132 = sbr.rel (%p130) target = $region20
        $region19: #{tpu_custom_call.1} parent=11 // pred_region
          _
        $region20: #{tpu_custom_call.1} parent=11 // pred_fallthru
          _
      $region12: #{tpu_custom_call.1} parent=5 // pred_fallthru
        _
      %p133 = scmp.lt.s32.totalorder %s10, 2
      // Predicated region
      $region21: #{tpu_custom_call.1} parent=5 // pred_check
        %p134 = pneg %p133
      $region22: #{tpu_custom_call.1} parent=5 // pred_check_branch
        %136 = sbr.rel (%p134) target = $region24
      $region23: #{tpu_custom_call.1} parent=5 // pred_region
        // Predicated region
        $region25: #{tpu_custom_call.1} parent=23 // pred_check
          %p137 = pneg %p30
        $region26: #{tpu_custom_call.1} parent=23 // pred_check_branch
          %139 = sbr.rel (%p137) target = $region28
        $region27: #{tpu_custom_call.1} parent=23 // pred_region
          %p140 = scmp.lt.s32.totalorder %s10, 1
          %s141 = scalar_select %p140, %s10, 1
          %s142 = smul.addr %s141, 4
          %s143 = scalar_lea.vmem %s0, %s142
        $region28: #{tpu_custom_call.1} parent=23 // pred_fallthru
          _
      $region24: #{tpu_custom_call.1} parent=5 // pred_fallthru
        _
      %p144 = scmp.le.s32.totalorder 1, %s10
      %p145 = scmp.lt.s32.totalorder %s10, 3
      %p146 = pnand %p144, %p145
      %p147 = pneg %p146
      // Predicated region
      $region29: #{tpu_custom_call.1} parent=5 // pred_check
        _
      $region30: #{tpu_custom_call.1} parent=5 // pred_check_branch
        %149 = sbr.rel (%p146) target = $region32
      $region31: #{tpu_custom_call.1} parent=5 // pred_region
        %s150 = ssub.s32 %s10, 1
        // Predicated region
        $region33: #{tpu_custom_call.1} parent=31 // pred_check
          %p151 = pneg %p57
        $region34: #{tpu_custom_call.1} parent=31 // pred_check_branch
          %153 = sbr.rel (%p151) target = $region36
        $region35: #{tpu_custom_call.1} parent=31 // pred_region
          %154 = dma.done [#allocation3], 128
        $region36: #{tpu_custom_call.1} parent=31 // pred_fallthru
          _
        %p155 = scmp.lt.s32.totalorder %s15, 1
        %s156 = scalar_select %p155, %s15, 1
        %s157 = smul.addr %s156, 4
        %s158 = scalar_lea.vmem %s0, %s157
        %p159 = pneg %p36
        %p160 = pneg %p33
        %p161 = pneg %p57
        %p162 = pneg %p54
        %p163 = pneg %p78
        %p164 = pneg %p75
        %p165 = pneg %p104
        %p166 = pneg %p101
        %p167 = scmp.lt.s32.totalorder %s15, 1
        %s168 = scalar_select %p167, %s15, 1
        %s169 = smul.addr %s168, 8
        %s170 = scalar_lea.vmem %s3, %s169
        %p171 = scmp.lt.s32.totalorder %s15, 1
        %s172 = scalar_select %p171, %s15, 1
        %s173 = smul.addr %s172, 4
        %s174 = scalar_lea.vmem %s0, %s173
        %p175 = scmp.lt.s32.totalorder %s15, 1
        %s176 = scalar_select %p175, %s15, 1
        %s177 = smul.addr %s176, 8
        %s178 = scalar_lea.vmem %s3, %s177
        %v179 = vld [vmem:[%s174] sm:$0xf]
        %v181 = vrot.slane %v179, 4
        %182 = vrot.lane.b32.xlu0 %v181, 127
        %v183 = vpop.permute.xlu0 %182
        %185 = vrot.lane.b32.xlu0 %v179, 126
        %v186 = vpop.permute.xlu0 %185
        %vm187 = vcmask 1043456
        %v188 = vsel %vm187, %v179, %v183
        %v189 = vld [vmem:[#allocation2] sm:$0x3f]
        %v190 = vld [vmem:[%s2] sm:$0x3f]
        %192 = vset.pattern.permute.xlu0 0
        %193 = vperm.xlu0 %192, %v190
        %v194 = vpop.permute.xlu0 %193
        %vm196 = vcmask 97280
        %v198 = vsel %vm196, %v189, 0
        %v200 = vsel %vm187, %v186, 0
        %202 = vmatprep.subr.mxu0 0.0
        %203 = vmatpush1.msra.mxu0 %v188
        %204 = vmatprep.subr.mxu0 0.0
        %205 = vmatpush1.msra.mxu0 %v200
        %206 = vmatprep.subr.mxu0 0.0
        %207 = vmatpush1.msra.mxu0 0.0
        %208 = vmatprep.subr.mxu0 0.0
        %209 = vmatpush1.msra.mxu0 0.0
        %210 = vmatprep.subr.mxu0 0.0
        %211 = vmatpush1.msra.mxu0 0.0
        %212 = vmatprep.subr.mxu0 0.0
        %213 = vmatpush1.msra.mxu0 0.0
        %214 = vmatprep.subr.mxu0 0.0
        %215 = vmatpush1.msra.mxu0 0.0
        %216 = vmatprep.subr.mxu0 0.0
        %217 = vmatpush1.msra.mxu0 0.0
        %218 = vmatprep.subr.mxu0 0.0
        %219 = vmatpush1.msra.mxu0 0.0
        %220 = vmatprep.subr.mxu0 0.0
        %221 = vmatpush1.msra.mxu0 0.0
        %222 = vmatprep.subr.mxu0 0.0
        %223 = vmatpush1.msra.mxu0 0.0
        %224 = vmatprep.subr.mxu0 0.0
        %225 = vmatpush1.msra.mxu0 0.0
        %226 = vmatprep.subr.mxu0 0.0
        %227 = vmatpush1.msra.mxu0 0.0
        %228 = vmatprep.subr.mxu0 0.0
        %229 = vmatpush1.msra.mxu0 0.0
        %230 = vmatprep.subr.mxu0 0.0
        %231 = vmatpush1.msra.mxu0 0.0
        %232 = vmatprep.subr.mxu0 0.0
        %233 = vmatpush1.msra.mxu0 0.0
        %234 = vmatprep.subr.mxu0 0.0
        %235 = vmatpush1.msra.mxu0 0.0
        %236 = vmatprep.subr.mxu0 0.0
        %237 = vmatpush1.msra.mxu0 0.0
        %238 = vmatprep.subr.mxu0 0.0
        %239 = vmatpush1.msra.mxu0 0.0
        %240 = vmatprep.subr.mxu0 0.0
        %241 = vmatpush1.msra.mxu0 0.0
        %242 = vmatprep.subr.mxu0 0.0
        %243 = vmatpush1.msra.mxu0 0.0
        %244 = vmatprep.subr.mxu0 0.0
        %245 = vmatpush1.msra.mxu0 0.0
        %246 = vmatprep.subr.mxu0 0.0
        %247 = vmatpush1.msra.mxu0 0.0
        %248 = vmatprep.subr.mxu0 0.0
        %249 = vmatpush1.msra.mxu0 0.0
        %250 = vmatprep.subr.mxu0 0.0
        %251 = vmatpush1.msra.mxu0 0.0
        %252 = vmatprep.subr.mxu0 0.0
        %253 = vmatpush1.msra.mxu0 0.0
        %254 = vmatprep.subr.mxu0 0.0
        %255 = vmatpush1.msra.mxu0 0.0
        %256 = vmatprep.subr.mxu0 0.0
        %257 = vmatpush1.msra.mxu0 0.0
        %258 = vmatprep.subr.mxu0 0.0
        %259 = vmatpush1.msra.mxu0 0.0
        %260 = vmatprep.subr.mxu0 0.0
        %261 = vmatpush1.msra.mxu0 0.0
        %262 = vmatprep.subr.mxu0 0.0
        %263 = vmatpush1.msra.mxu0 0.0
        %264 = vmatprep.subr.mxu0 0.0
        %265 = vmatpush1.msra.mxu0 0.0
        %266 = vmatprep.mubr.f32.mxu0 0.0
        %267 = vmatmul.mubr.f32.gmra.mrb[0].mxu0 %v198
        %v268 = vpop.f32.mrb[0].mxu0
        %v269 = vadd.f32 %v194, %v268
        %v270 = vpop.f32.mrb[0].mxu0
        %271 = vdwg.mxu0
        %vm272 = vcmask 128000
        %273 = vst.msk [vmem:[%s178] sm:$0x3f] %vm272, %v269
        %p274 = scmp.lt.s32.totalorder %s15, 1
        %s275 = scalar_select %p274, %s15, 1
        %s276 = smul.addr %s275, 8
        %s277 = scalar_lea.vmem %s3, %s276
        // Predicated region
        $region37: #{tpu_custom_call.1} parent=31 // pred_check
          %p278 = pneg %p101
        $region38: #{tpu_custom_call.1} parent=31 // pred_check_branch
          %280 = sbr.rel (%p278) target = $region40
        $region39: #{tpu_custom_call.1} parent=31 // pred_region
          _
        $region40: #{tpu_custom_call.1} parent=31 // pred_fallthru
          _
      $region32: #{tpu_custom_call.1} parent=5 // pred_fallthru
        _
      %p281 = scmp.le.s32.totalorder 2, %s10
      // Predicated region
      $region41: #{tpu_custom_call.1} parent=5 // pred_check
        %p282 = pneg %p281
      $region42: #{tpu_custom_call.1} parent=5 // pred_check_branch
        %284 = sbr.rel (%p282) target = $region44
      $region43: #{tpu_custom_call.1} parent=5 // pred_region
        %s285 = ssub.s32 %s10, 2
        // Predicated region
        $region45: #{tpu_custom_call.1} parent=43 // pred_check
          %p286 = pneg %p107
        $region46: #{tpu_custom_call.1} parent=43 // pred_check_branch
          %288 = sbr.rel (%p286) target = $region48
        $region47: #{tpu_custom_call.1} parent=43 // pred_region
          %p289 = scmp.lt.s32.totalorder %s16, 1
          %s290 = scalar_select %p289, %s16, 1
          %s291 = smul.addr %s290, 8
          %s292 = scalar_lea.vmem %s3, %s291
        $region48: #{tpu_custom_call.1} parent=43 // pred_fallthru
          _
      $region44: #{tpu_custom_call.1} parent=5 // pred_fallthru
        _
    $region6: #{tpu_custom_call.1} parent=1 // loop_footer
      %s14 = sadd.s32 1, %s10
    $region7: #{tpu_custom_call.1} parent=1 // loop_footer_branch
      %9 = sbr.rel target = $region3
    $region8: #{tpu_custom_call.1} parent=1 // loop_exit
      _
    %293 = vsyncpa [#allocation3], 1
    %s294 = scalar_lea.sflag [#allocation3], 1
    %295 = vsyncpa %s294, 1

</llo_original>
